<compile_context>
chip_gen: v7x
topology: tpu7x:2x2x1
jax: 0.10.0
libtpu: 0.0.40
codegen_flags: <defaults>
</compile_context>

<pallas_src>
import jax
import jax.numpy as jnp
from jax.experimental import pallas as pl
from jax.experimental.pallas import tpu as pltpu

_SUBLANE = 8
_LANE = 128


def _round_up(x, m):
    return ((x + m - 1) // m) * m


def _multimodal_kernel(x1_ref, x2_ref, w1_ref, b1_ref, w2_ref, b2_ref,
                       w3a_ref, w3b_ref, b3_ref, o_ref):
    # Branch 1 / Branch 2: Linear + bias + ReLU.  MXU dots accumulate in f32;
    # bias-add and ReLU stay in f32 (v5e VPU has no bf16 path).
    h1 = jnp.dot(x1_ref[...], w1_ref[...], preferred_element_type=jnp.float32)
    h1 = jnp.maximum(h1 + b1_ref[...], 0.0)
    h2 = jnp.dot(x2_ref[...], w2_ref[...], preferred_element_type=jnp.float32)
    h2 = jnp.maximum(h2 + b2_ref[...], 0.0)

    # fc3 on the (implicit) concat: [h1|h2] @ W3 == h1 @ W3[:H] + h2 @ W3[H:].
    mm_dtype = w3a_ref.dtype
    out = (jnp.dot(h1.astype(mm_dtype), w3a_ref[...],
                   preferred_element_type=jnp.float32)
           + jnp.dot(h2.astype(mm_dtype), w3b_ref[...],
                     preferred_element_type=jnp.float32)
           + b3_ref[...])
    o_ref[...] = out.astype(o_ref.dtype)


def init_params(key, input_size1, input_size2, hidden_size, out_size=2):
    """PyTorch-style parameters: weights stored as [in_features, out_features]."""
    k1, k2, k3, k4, k5, k6 = jax.random.split(key, 6)

    def unif(k, shape, fan_in):
        bound = 1.0 / (fan_in ** 0.5)
        return jax.random.uniform(k, shape, jnp.float32, -bound, bound)

    w1 = unif(k1, (input_size1, hidden_size), input_size1)
    b1 = unif(k2, (hidden_size,), input_size1)
    w2 = unif(k3, (input_size2, hidden_size), input_size2)
    b2 = unif(k4, (hidden_size,), input_size2)
    w3 = unif(k5, (hidden_size * 2, out_size), hidden_size * 2)
    b3 = unif(k6, (out_size,), hidden_size * 2)
    return (w1, b1, w2, b2, w3, b3)


def prepare_params(params, matmul_dtype=jnp.float32):
    """One-time (outside the call path) repackaging of the weights:
       split fc3 weight per branch, pad fc3 to a narrow 8-lane slab, reshape
       biases to (1, N), and optionally pre-cast matmul weights (e.g. bf16)."""
    w1, b1, w2, b2, w3, b3 = params
    hidden = w1.shape[1]
    out_dim = w3.shape[1]

    # Narrow output slab: pad to 8 lanes (not 128) to keep HBM writeback small.
    n_pad = _round_up(max(out_dim, 1), _SUBLANE)
    w3a = jnp.zeros((hidden, n_pad), jnp.float32).at[:, :out_dim].set(w3[:hidden])
    w3b = jnp.zeros((hidden, n_pad), jnp.float32).at[:, :out_dim].set(w3[hidden:])
    b3p = jnp.zeros((1, n_pad), jnp.float32).at[0, :out_dim].set(b3)

    return {
        "w1": w1.astype(matmul_dtype),
        "w2": w2.astype(matmul_dtype),
        "w3a": w3a.astype(matmul_dtype),
        "w3b": w3b.astype(matmul_dtype),
        "b1": b1.reshape(1, hidden).astype(jnp.float32),
        "b2": b2.reshape(1, hidden).astype(jnp.float32),
        "b3": b3p,
        "out_dim": out_dim,
        "matmul_dtype": matmul_dtype,
    }


def multimodal_forward(x1, x2, prepared, *, block_batch=1024, core_parallel=False):
    w1, w2 = prepared["w1"], prepared["w2"]
    w3a, w3b = prepared["w3a"], prepared["w3b"]
    b1, b2, b3 = prepared["b1"], prepared["b2"], prepared["b3"]
    out_dim = prepared["out_dim"]
    mm_dtype = prepared["matmul_dtype"]

    batch = x1.shape[0]
    in1, hidden = w1.shape
    in2 = w2.shape[0]
    n_pad = w3a.shape[1]

    # Cast activations at the HBM boundary only when a narrower matmul dtype
    # was requested (halves input DMA bytes); f32 -> f32 is a no-op.
    x1 = x1.astype(mm_dtype)
    x2 = x2.astype(mm_dtype)

    # Batch tile: large (amortizes the ~0.35us per-grid-step overhead), a
    # multiple of 8 sublanes, never larger than the rounded-up batch.  The
    # ragged tail block (if any) is handled by Pallas, not by jnp.pad.
    tb = max(_SUBLANE, min(block_batch, _round_up(batch, _SUBLANE)))
    tb = _round_up(tb, _SUBLANE)
    grid = (pl.cdiv(batch, tb),)

    # On v7x (2 TensorCores/chip) pass core_parallel=True so the batch grid is
    # actually sharded across both cores; plain "parallel" is the portable
    # default for single-TC v5e/v6e.
    batch_sem = pltpu.CORE_PARALLEL if core_parallel else "parallel"

    out_padded = pl.pallas_call(
        _multimodal_kernel,
        out_shape=jax.ShapeDtypeStruct((batch, n_pad), jnp.float32),
        grid_spec=pltpu.PrefetchScalarGridSpec(
            num_scalar_prefetch=0,
            grid=grid,
            in_specs=[
                pl.BlockSpec((tb, in1), lambda i: (i, 0)),        # x1: tiled over batch
                pl.BlockSpec((tb, in2), lambda i: (i, 0)),        # x2: tiled over batch
                pl.BlockSpec((in1, hidden), lambda i: (0, 0)),    # W1: VMEM-resident
                pl.BlockSpec((1, hidden), lambda i: (0, 0)),      # b1: resident
                pl.BlockSpec((in2, hidden), lambda i: (0, 0)),    # W2: resident
                pl.BlockSpec((1, hidden), lambda i: (0, 0)),      # b2: resident
                pl.BlockSpec((hidden, n_pad), lambda i: (0, 0)),  # W3 (top half, padded): resident
                pl.BlockSpec((hidden, n_pad), lambda i: (0, 0)),  # W3 (bottom half, padded): resident
                pl.BlockSpec((1, n_pad), lambda i: (0, 0)),       # b3 (padded): resident
            ],
            out_specs=pl.BlockSpec((tb, n_pad), lambda i: (i, 0)),
        ),
        compiler_params=pltpu.CompilerParams(
            dimension_semantics=(batch_sem,),
            vmem_limit_bytes=32 * 1024 * 1024,   # safe on v7x's 64 MiB VMEM
        ),
    )(x1, x2, w1, b1, w2, b2, w3a, w3b, b3)

    return out_padded[:, :out_dim]


def reference_forward(x1, x2, params):
    w1, b1, w2, b2, w3, b3 = params
    h1 = jnp.maximum(x1 @ w1 + b1, 0.0)
    h2 = jnp.maximum(x2 @ w2 + b2, 0.0)
    combined = jnp.concatenate([h1, h2], axis=1)
    return combined @ w3 + b3


if __name__ == "__main__":
    key = jax.random.PRNGKey(0)
    kx1, kx2, kp = jax.random.split(key, 3)

    batch = 8
    input_size1 = 32   # modality-1 feature dim
    input_size2 = 16   # modality-2 feature dim
    hidden_size = 32

    x1 = jax.random.normal(kx1, (batch, input_size1), jnp.float32)
    x2 = jax.random.normal(kx2, (batch, input_size2), jnp.float32)
    params = init_params(kp, input_size1, input_size2, hidden_size)
    prepared = prepare_params(params)          # f32 matmul path: exact vs reference

    out = multimodal_forward(x1, x2, prepared)
    out = jax.block_until_ready(out)

    ref = reference_forward(x1, x2, params)
    assert out.shape == (batch, 2), out.shape
    assert jnp.allclose(out, ref, atol=1e-4, rtol=1e-4), "mismatch vs reference"

    print("KERNEL_OK")
</pallas_src>

<mosaic_0001>
module attributes {stable_mosaic.version = 11 : i64} {
  func.func @_multimodal_kernel(%arg0: i32, %arg1: memref<8x32xf32, #tpu.memory_space<vmem>>, %arg2: memref<8x16xf32, #tpu.memory_space<vmem>>, %arg3: memref<32x32xf32, #tpu.memory_space<vmem>>, %arg4: memref<1x32xf32, #tpu.memory_space<vmem>>, %arg5: memref<16x32xf32, #tpu.memory_space<vmem>>, %arg6: memref<1x32xf32, #tpu.memory_space<vmem>>, %arg7: memref<32x8xf32, #tpu.memory_space<vmem>>, %arg8: memref<32x8xf32, #tpu.memory_space<vmem>>, %arg9: memref<1x8xf32, #tpu.memory_space<vmem>>, %arg10: memref<8x8xf32, #tpu.memory_space<vmem>>) attributes {dimension_semantics = [#tpu.dimension_semantics<parallel>], iteration_bounds = array<i64: 1>, scalar_prefetch = 0 : i64, scratch_operands = 0 : i64, tpu.core_type = #tpu.core_type<tc>, window_params = [{transform_indices = @transform_0, window_bounds = array<i64: 8, 32>}, {transform_indices = @transform_1, window_bounds = array<i64: 8, 16>}, {pipeline_mode = #tpu.pipeline_mode<synchronous>, transform_indices = @transform_2, window_bounds = array<i64: 32, 32>}, {pipeline_mode = #tpu.pipeline_mode<synchronous>, transform_indices = @transform_3, window_bounds = array<i64: 1, 32>}, {pipeline_mode = #tpu.pipeline_mode<synchronous>, transform_indices = @transform_4, window_bounds = array<i64: 16, 32>}, {pipeline_mode = #tpu.pipeline_mode<synchronous>, transform_indices = @transform_5, window_bounds = array<i64: 1, 32>}, {pipeline_mode = #tpu.pipeline_mode<synchronous>, transform_indices = @transform_6, window_bounds = array<i64: 32, 8>}, {pipeline_mode = #tpu.pipeline_mode<synchronous>, transform_indices = @transform_7, window_bounds = array<i64: 32, 8>}, {pipeline_mode = #tpu.pipeline_mode<synchronous>, transform_indices = @transform_8, window_bounds = array<i64: 1, 8>}, {transform_indices = @transform_9, window_bounds = array<i64: 8, 8>}]} {
    %c0 = arith.constant 0 : index
    %c0_0 = arith.constant 0 : index
    %0 = vector.load %arg1[%c0, %c0_0] : memref<8x32xf32, #tpu.memory_space<vmem>>, vector<8x32xf32>
    %c0_1 = arith.constant 0 : index
    %c0_2 = arith.constant 0 : index
    %1 = vector.load %arg3[%c0_1, %c0_2] : memref<32x32xf32, #tpu.memory_space<vmem>>, vector<32x32xf32>
    %cst = arith.constant dense<0.000000e+00> : vector<8x32xf32>
    %2 = tpu.matmul %0, %1, %cst {dimension_numbers = #tpu.dot_dimension_numbers<[1], [0], [0], [1], [0, 0, 1, 1], [], []>} : vector<8x32xf32>, vector<32x32xf32>, vector<8x32xf32> -> vector<8x32xf32>
    %c0_3 = arith.constant 0 : index
    %c0_4 = arith.constant 0 : index
    %3 = vector.load %arg4[%c0_3, %c0_4] : memref<1x32xf32, #tpu.memory_space<vmem>>, vector<1x32xf32>
    %4 = vector.broadcast %3 : vector<1x32xf32> to vector<8x32xf32>
    %5 = arith.addf %2, %4 : vector<8x32xf32>
    %cst_5 = arith.constant 0.000000e+00 : f32
    %6 = vector.broadcast %cst_5 : f32 to vector<8x32xf32>
    %7 = arith.maximumf %5, %6 : vector<8x32xf32>
    %c0_6 = arith.constant 0 : index
    %c0_7 = arith.constant 0 : index
    %8 = vector.load %arg2[%c0_6, %c0_7] : memref<8x16xf32, #tpu.memory_space<vmem>>, vector<8x16xf32>
    %c0_8 = arith.constant 0 : index
    %c0_9 = arith.constant 0 : index
    %9 = vector.load %arg5[%c0_8, %c0_9] : memref<16x32xf32, #tpu.memory_space<vmem>>, vector<16x32xf32>
    %cst_10 = arith.constant dense<0.000000e+00> : vector<8x32xf32>
    %10 = tpu.matmul %8, %9, %cst_10 {dimension_numbers = #tpu.dot_dimension_numbers<[1], [0], [0], [1], [0, 0, 1, 1], [], []>} : vector<8x16xf32>, vector<16x32xf32>, vector<8x32xf32> -> vector<8x32xf32>
    %c0_11 = arith.constant 0 : index
    %c0_12 = arith.constant 0 : index
    %11 = vector.load %arg6[%c0_11, %c0_12] : memref<1x32xf32, #tpu.memory_space<vmem>>, vector<1x32xf32>
    %12 = vector.broadcast %11 : vector<1x32xf32> to vector<8x32xf32>
    %13 = arith.addf %10, %12 : vector<8x32xf32>
    %cst_13 = arith.constant 0.000000e+00 : f32
    %14 = vector.broadcast %cst_13 : f32 to vector<8x32xf32>
    %15 = arith.maximumf %13, %14 : vector<8x32xf32>
    %c0_14 = arith.constant 0 : index
    %c0_15 = arith.constant 0 : index
    %16 = vector.load %arg7[%c0_14, %c0_15] : memref<32x8xf32, #tpu.memory_space<vmem>>, vector<32x8xf32>
    %cst_16 = arith.constant dense<0.000000e+00> : vector<8x8xf32>
    %17 = tpu.matmul %7, %16, %cst_16 {dimension_numbers = #tpu.dot_dimension_numbers<[1], [0], [0], [1], [0, 0, 1, 1], [], []>} : vector<8x32xf32>, vector<32x8xf32>, vector<8x8xf32> -> vector<8x8xf32>
    %c0_17 = arith.constant 0 : index
    %c0_18 = arith.constant 0 : index
    %18 = vector.load %arg8[%c0_17, %c0_18] : memref<32x8xf32, #tpu.memory_space<vmem>>, vector<32x8xf32>
    %cst_19 = arith.constant dense<0.000000e+00> : vector<8x8xf32>
    %19 = tpu.matmul %15, %18, %cst_19 {dimension_numbers = #tpu.dot_dimension_numbers<[1], [0], [0], [1], [0, 0, 1, 1], [], []>} : vector<8x32xf32>, vector<32x8xf32>, vector<8x8xf32> -> vector<8x8xf32>
    %20 = arith.addf %17, %19 : vector<8x8xf32>
    %c0_20 = arith.constant 0 : index
    %c0_21 = arith.constant 0 : index
    %21 = vector.load %arg9[%c0_20, %c0_21] : memref<1x8xf32, #tpu.memory_space<vmem>>, vector<1x8xf32>
    %22 = vector.broadcast %21 : vector<1x8xf32> to vector<8x8xf32>
    %23 = arith.addf %20, %22 : vector<8x8xf32>
    %c0_22 = arith.constant 0 : index
    %c0_23 = arith.constant 0 : index
    %24 = vector.load %arg10[%c0_22, %c0_23] : memref<8x8xf32, #tpu.memory_space<vmem>>, vector<8x8xf32>
    tpu.vector_store %arg10[%c0_22, %c0_23], %23 {strides = array<i32>} : memref<8x8xf32, #tpu.memory_space<vmem>>, vector<8x8xf32>,
    return
  }
  func.func @transform_0(%arg0: i32) -> (i32, i32) {
    %c0_i32 = arith.constant 0 : i32
    %c0_i32_0 = arith.constant 0 : i32
    return %arg0, %c0_i32 : i32, i32
  }
  func.func @transform_1(%arg0: i32) -> (i32, i32) {
    %c0_i32 = arith.constant 0 : i32
    %c0_i32_0 = arith.constant 0 : i32
    return %arg0, %c0_i32 : i32, i32
  }
  func.func @transform_2(%arg0: i32) -> (i32, i32) {
    %c0_i32 = arith.constant 0 : i32
    %c0_i32_0 = arith.constant 0 : i32
    %c0_i32_1 = arith.constant 0 : i32
    return %c0_i32, %c0_i32_0 : i32, i32
  }
  func.func @transform_3(%arg0: i32) -> (i32, i32) {
    %c0_i32 = arith.constant 0 : i32
    %c0_i32_0 = arith.constant 0 : i32
    %c0_i32_1 = arith.constant 0 : i32
    return %c0_i32, %c0_i32_0 : i32, i32
  }
  func.func @transform_4(%arg0: i32) -> (i32, i32) {
    %c0_i32 = arith.constant 0 : i32
    %c0_i32_0 = arith.constant 0 : i32
    %c0_i32_1 = arith.constant 0 : i32
    return %c0_i32, %c0_i32_0 : i32, i32
  }
  func.func @transform_5(%arg0: i32) -> (i32, i32) {
    %c0_i32 = arith.constant 0 : i32
    %c0_i32_0 = arith.constant 0 : i32
    %c0_i32_1 = arith.constant 0 : i32
    return %c0_i32, %c0_i32_0 : i32, i32
  }
  func.func @transform_6(%arg0: i32) -> (i32, i32) {
    %c0_i32 = arith.constant 0 : i32
    %c0_i32_0 = arith.constant 0 : i32
    %c0_i32_1 = arith.constant 0 : i32
    return %c0_i32, %c0_i32_0 : i32, i32
  }
  func.func @transform_7(%arg0: i32) -> (i32, i32) {
    %c0_i32 = arith.constant 0 : i32
    %c0_i32_0 = arith.constant 0 : i32
    %c0_i32_1 = arith.constant 0 : i32
    return %c0_i32, %c0_i32_0 : i32, i32
  }
  func.func @transform_8(%arg0: i32) -> (i32, i32) {
    %c0_i32 = arith.constant 0 : i32
    %c0_i32_0 = arith.constant 0 : i32
    %c0_i32_1 = arith.constant 0 : i32
    return %c0_i32, %c0_i32_0 : i32, i32
  }
  func.func @transform_9(%arg0: i32) -> (i32, i32) {
    %c0_i32 = arith.constant 0 : i32
    %c0_i32_0 = arith.constant 0 : i32
    return %arg0, %c0_i32 : i32, i32
  }
}

</mosaic_0001>

<llo_original>
// kernel: tpu_custom_call.1
$region0: #{tpu_custom_call.1}
  #allocation0 [shape = 'u32[]', space=smem, size = 0x4, offset = 0x4, fixed_abs, tag = 'smem constant byte address 0x4 - core index']
  #allocation1 [shape = 'u32[144,128]{1,0:T(1,128)}', space=vmem, size = 0x12000, scoped, tag = 'internal scratch']
  %s0 = inlined_call_operand.vmem [shape: f32[8,32], index: 0, kind: input, shape index: {}]
  %s1 = inlined_call_operand.vmem [shape: f32[8,16], index: 1, kind: input, shape index: {}]
  %s2 = inlined_call_operand.vmem [shape: f32[32,32], index: 2, kind: input, shape index: {}]
  %s3 = inlined_call_operand.vmem [shape: f32[1,32], index: 3, kind: input, shape index: {}]
  %s4 = inlined_call_operand.vmem [shape: f32[16,32], index: 4, kind: input, shape index: {}]
  %s5 = inlined_call_operand.vmem [shape: f32[1,32], index: 5, kind: input, shape index: {}]
  %s6 = inlined_call_operand.vmem [shape: f32[32,8], index: 6, kind: input, shape index: {}]
  %s7 = inlined_call_operand.vmem [shape: f32[32,8], index: 7, kind: input, shape index: {}]
  %s8 = inlined_call_operand.vmem [shape: f32[1,8], index: 8, kind: input, shape index: {}]
  %s9 = inlined_call_operand.hbm [shape: f32[8,8], index: 9, kind: output, shape index: {}]
  %s10 = sld [smem:[#allocation0]]
  $region46: #{tpu_custom_call.1} parent=0
    _
  %s12 = ssub.s32 1, %s10
  %s13 = scalar_select 0, %s12, %s10
  $region1: #{tpu_custom_call.1} parent=0
    #allocation2 [shape = 'u8[4096]{0}', space=vmem, size = 0x1000, scoped, tag = 'output window, operand 0, single buffered']
    #allocation3 [shape = 's32[1]{0}', space=sflag, size = 0x4, scoped, tag = 'scoped memory for tpu_custom_call.1']
    %14 = vsyncpa [#allocation3], 0
    // Predicated region
    $region2: #{tpu_custom_call.1} parent=1 // pred_check
      _
    $region3: #{tpu_custom_call.1} parent=1 // pred_check_branch
      %16 = sbr.rel (0) target = $region5
    $region4: #{tpu_custom_call.1} parent=1 // pred_region
      _
    $region5: #{tpu_custom_call.1} parent=1 // pred_fallthru
      _
    // Predicated region
    $region6: #{tpu_custom_call.1} parent=1 // pred_check
      _
    $region7: #{tpu_custom_call.1} parent=1 // pred_check_branch
      %18 = sbr.rel (0) target = $region9
    $region8: #{tpu_custom_call.1} parent=1 // pred_region
      _
    $region9: #{tpu_custom_call.1} parent=1 // pred_fallthru
      _
    // Predicated region
    $region10: #{tpu_custom_call.1} parent=1 // pred_check
      _
    $region11: #{tpu_custom_call.1} parent=1 // pred_check_branch
      %20 = sbr.rel (0) target = $region13
    $region12: #{tpu_custom_call.1} parent=1 // pred_region
      _
    $region13: #{tpu_custom_call.1} parent=1 // pred_fallthru
      _
    // Predicated region
    $region14: #{tpu_custom_call.1} parent=1 // pred_check
      _
    $region15: #{tpu_custom_call.1} parent=1 // pred_check_branch
      %22 = sbr.rel (0) target = $region17
    $region16: #{tpu_custom_call.1} parent=1 // pred_region
      _
    $region17: #{tpu_custom_call.1} parent=1 // pred_fallthru
      _
    // Predicated region
    $region18: #{tpu_custom_call.1} parent=1 // pred_check
      _
    $region19: #{tpu_custom_call.1} parent=1 // pred_check_branch
      %24 = sbr.rel (0) target = $region21
    $region20: #{tpu_custom_call.1} parent=1 // pred_region
      _
    $region21: #{tpu_custom_call.1} parent=1 // pred_fallthru
      _
    // Predicated region
    $region22: #{tpu_custom_call.1} parent=1 // pred_check
      _
    $region23: #{tpu_custom_call.1} parent=1 // pred_check_branch
      %26 = sbr.rel (0) target = $region25
    $region24: #{tpu_custom_call.1} parent=1 // pred_region
      _
    $region25: #{tpu_custom_call.1} parent=1 // pred_fallthru
      _
    // Predicated region
    $region26: #{tpu_custom_call.1} parent=1 // pred_check
      _
    $region27: #{tpu_custom_call.1} parent=1 // pred_check_branch
      %28 = sbr.rel (0) target = $region29
    $region28: #{tpu_custom_call.1} parent=1 // pred_region
      _
    $region29: #{tpu_custom_call.1} parent=1 // pred_fallthru
      _
    // Predicated region
    $region30: #{tpu_custom_call.1} parent=1 // pred_check
      _
    $region31: #{tpu_custom_call.1} parent=1 // pred_check_branch
      %30 = sbr.rel (0) target = $region33
    $region32: #{tpu_custom_call.1} parent=1 // pred_region
      _
    $region33: #{tpu_custom_call.1} parent=1 // pred_fallthru
      _
    // Predicated region
    $region34: #{tpu_custom_call.1} parent=1 // pred_check
      _
    $region35: #{tpu_custom_call.1} parent=1 // pred_check_branch
      %32 = sbr.rel (0) target = $region37
    $region36: #{tpu_custom_call.1} parent=1 // pred_region
      _
    $region37: #{tpu_custom_call.1} parent=1 // pred_fallthru
      _
    %v33 = vld [vmem:[%s0] sm:$0xff]
    %v34 = vld [vmem:[%s2] sm:$0xff]
    %v35 = vld [vmem:[%s2 + $0x8] sm:$0xff]
    %v36 = vld [vmem:[%s2 + $0x10] sm:$0xff]
    %v37 = vld [vmem:[%s2 + $0x18] sm:$0xff]
    %v38 = vld [vmem:[%s3] sm:$0x1]
    %v40 = vlaneseq
    %v41 = vshrl.u32 %v40, 7
    %v42 = vsub.s32 0, %v41
    %v43 = vrot.slane %v38, %v42
    %vm45 = vcmask 261120
    %v47 = vsel %vm45, %v33, 0
    %49 = vmatprep.subr.mxu0 0.0
    %50 = vmatpush1.msra.mxu0 %v34
    %51 = vmatprep.subr.mxu0 0.0
    %52 = vmatpush1.msra.mxu0 %v35
    %53 = vmatprep.subr.mxu0 0.0
    %54 = vmatpush1.msra.mxu0 %v36
    %55 = vmatprep.subr.mxu0 0.0
    %56 = vmatpush1.msra.mxu0 %v37
    %57 = vmatprep.subr.mxu0 0.0
    %58 = vmatpush1.msra.mxu0 0.0
    %59 = vmatprep.subr.mxu0 0.0
    %60 = vmatpush1.msra.mxu0 0.0
    %61 = vmatprep.subr.mxu0 0.0
    %62 = vmatpush1.msra.mxu0 0.0
    %63 = vmatprep.subr.mxu0 0.0
    %64 = vmatpush1.msra.mxu0 0.0
    %65 = vmatprep.subr.mxu0 0.0
    %66 = vmatpush1.msra.mxu0 0.0
    %67 = vmatprep.subr.mxu0 0.0
    %68 = vmatpush1.msra.mxu0 0.0
    %69 = vmatprep.subr.mxu0 0.0
    %70 = vmatpush1.msra.mxu0 0.0
    %71 = vmatprep.subr.mxu0 0.0
    %72 = vmatpush1.msra.mxu0 0.0
    %73 = vmatprep.subr.mxu0 0.0
    %74 = vmatpush1.msra.mxu0 0.0
    %75 = vmatprep.subr.mxu0 0.0
    %76 = vmatpush1.msra.mxu0 0.0
    %77 = vmatprep.subr.mxu0 0.0
    %78 = vmatpush1.msra.mxu0 0.0
    %79 = vmatprep.subr.mxu0 0.0
    %80 = vmatpush1.msra.mxu0 0.0
    %81 = vmatprep.subr.mxu0 0.0
    %82 = vmatpush1.msra.mxu0 0.0
    %83 = vmatprep.subr.mxu0 0.0
    %84 = vmatpush1.msra.mxu0 0.0
    %85 = vmatprep.subr.mxu0 0.0
    %86 = vmatpush1.msra.mxu0 0.0
    %87 = vmatprep.subr.mxu0 0.0
    %88 = vmatpush1.msra.mxu0 0.0
    %89 = vmatprep.subr.mxu0 0.0
    %90 = vmatpush1.msra.mxu0 0.0
    %91 = vmatprep.subr.mxu0 0.0
    %92 = vmatpush1.msra.mxu0 0.0
    %93 = vmatprep.subr.mxu0 0.0
    %94 = vmatpush1.msra.mxu0 0.0
    %95 = vmatprep.subr.mxu0 0.0
    %96 = vmatpush1.msra.mxu0 0.0
    %97 = vmatprep.subr.mxu0 0.0
    %98 = vmatpush1.msra.mxu0 0.0
    %99 = vmatprep.subr.mxu0 0.0
    %100 = vmatpush1.msra.mxu0 0.0
    %101 = vmatprep.subr.mxu0 0.0
    %102 = vmatpush1.msra.mxu0 0.0
    %103 = vmatprep.subr.mxu0 0.0
    %104 = vmatpush1.msra.mxu0 0.0
    %105 = vmatprep.subr.mxu0 0.0
    %106 = vmatpush1.msra.mxu0 0.0
    %107 = vmatprep.subr.mxu0 0.0
    %108 = vmatpush1.msra.mxu0 0.0
    %109 = vmatprep.subr.mxu0 0.0
    %110 = vmatpush1.msra.mxu0 0.0
    %111 = vmatprep.subr.mxu0 0.0
    %112 = vmatpush1.msra.mxu0 0.0
    %113 = vmatprep.mubr.f32.mxu0 0.0
    %114 = vmatmul.mubr.f32.gmra.mrb[0].mxu0 %v47
    %v115 = vpop.f32.mrb[0].mxu0
    %v116 = vadd.f32 %v43, %v115
    %v117 = vpop.f32.mrb[0].mxu0
    %118 = vdwg.mxu0
    %v119 = vmax.f32 %v116, 0.0
    %v120 = vld [vmem:[%s1] sm:$0xff]
    %v121 = vld [vmem:[%s4] sm:$0xff]
    %v122 = vld [vmem:[%s4 + $0x8] sm:$0xff]
    %v123 = vld [vmem:[%s5] sm:$0x1]
    %v125 = vlaneseq
    %v126 = vshrl.u32 %v125, 7
    %v127 = vsub.s32 0, %v126
    %v128 = vrot.slane %v123, %v127
    %vm130 = vcmask 130048
    %v132 = vsel %vm130, %v120, 0
    %134 = vmatprep.subr.mxu0 0.0
    %135 = vmatpush1.msra.mxu0 %v121
    %136 = vmatprep.subr.mxu0 0.0
    %137 = vmatpush1.msra.mxu0 %v122
    %138 = vmatprep.subr.mxu0 0.0
    %139 = vmatpush1.msra.mxu0 0.0
    %140 = vmatprep.subr.mxu0 0.0
    %141 = vmatpush1.msra.mxu0 0.0
    %142 = vmatprep.subr.mxu0 0.0
    %143 = vmatpush1.msra.mxu0 0.0
    %144 = vmatprep.subr.mxu0 0.0
    %145 = vmatpush1.msra.mxu0 0.0
    %146 = vmatprep.subr.mxu0 0.0
    %147 = vmatpush1.msra.mxu0 0.0
    %148 = vmatprep.subr.mxu0 0.0
    %149 = vmatpush1.msra.mxu0 0.0
    %150 = vmatprep.subr.mxu0 0.0
    %151 = vmatpush1.msra.mxu0 0.0
    %152 = vmatprep.subr.mxu0 0.0
    %153 = vmatpush1.msra.mxu0 0.0
    %154 = vmatprep.subr.mxu0 0.0
    %155 = vmatpush1.msra.mxu0 0.0
    %156 = vmatprep.subr.mxu0 0.0
    %157 = vmatpush1.msra.mxu0 0.0
    %158 = vmatprep.subr.mxu0 0.0
    %159 = vmatpush1.msra.mxu0 0.0
    %160 = vmatprep.subr.mxu0 0.0
    %161 = vmatpush1.msra.mxu0 0.0
    %162 = vmatprep.subr.mxu0 0.0
    %163 = vmatpush1.msra.mxu0 0.0
    %164 = vmatprep.subr.mxu0 0.0
    %165 = vmatpush1.msra.mxu0 0.0
    %166 = vmatprep.subr.mxu0 0.0
    %167 = vmatpush1.msra.mxu0 0.0
    %168 = vmatprep.subr.mxu0 0.0
    %169 = vmatpush1.msra.mxu0 0.0
    %170 = vmatprep.subr.mxu0 0.0
    %171 = vmatpush1.msra.mxu0 0.0
    %172 = vmatprep.subr.mxu0 0.0
    %173 = vmatpush1.msra.mxu0 0.0
    %174 = vmatprep.subr.mxu0 0.0
    %175 = vmatpush1.msra.mxu0 0.0
    %176 = vmatprep.subr.mxu0 0.0
    %177 = vmatpush1.msra.mxu0 0.0
    %178 = vmatprep.subr.mxu0 0.0
    %179 = vmatpush1.msra.mxu0 0.0
    %180 = vmatprep.subr.mxu0 0.0
    %181 = vmatpush1.msra.mxu0 0.0
    %182 = vmatprep.subr.mxu0 0.0
    %183 = vmatpush1.msra.mxu0 0.0
    %184 = vmatprep.subr.mxu0 0.0
    %185 = vmatpush1.msra.mxu0 0.0
    %186 = vmatprep.subr.mxu0 0.0
    %187 = vmatpush1.msra.mxu0 0.0
    %188 = vmatprep.subr.mxu0 0.0
    %189 = vmatpush1.msra.mxu0 0.0
    %190 = vmatprep.subr.mxu0 0.0
    %191 = vmatpush1.msra.mxu0 0.0
    %192 = vmatprep.subr.mxu0 0.0
    %193 = vmatpush1.msra.mxu0 0.0
    %194 = vmatprep.subr.mxu0 0.0
    %195 = vmatpush1.msra.mxu0 0.0
    %196 = vmatprep.subr.mxu0 0.0
    %197 = vmatpush1.msra.mxu0 0.0
    %198 = vmatprep.mubr.f32.mxu0 0.0
    %199 = vmatmul.mubr.f32.gmra.mrb[0].mxu0 %v132
    %v200 = vpop.f32.mrb[0].mxu0
    %v201 = vadd.f32 %v128, %v200
    %v202 = vpop.f32.mrb[0].mxu0
    %203 = vdwg.mxu0
    %v204 = vmax.f32 %v201, 0.0
    %v205 = vld [vmem:[%s6] sm:$0xff]
    %v206 = vld [vmem:[%s6 + $0x8] sm:$0xff]
    %v207 = vld [vmem:[%s6 + $0x10] sm:$0xff]
    %v208 = vld [vmem:[%s6 + $0x18] sm:$0xff]
    %v209 = vld [vmem:[%s7] sm:$0xff]
    %v210 = vld [vmem:[%s7 + $0x8] sm:$0xff]
    %v211 = vld [vmem:[%s7 + $0x10] sm:$0xff]
    %v212 = vld [vmem:[%s7 + $0x18] sm:$0xff]
    %v214 = vsel %vm45, %v204, 0
    %216 = vmatprep.subr.mxu0 0.0
    %217 = vmatpush1.msra.mxu0 %v209
    %218 = vmatprep.subr.mxu0 0.0
    %219 = vmatpush1.msra.mxu0 %v210
    %220 = vmatprep.subr.mxu0 0.0
    %221 = vmatpush1.msra.mxu0 %v211
    %222 = vmatprep.subr.mxu0 0.0
    %223 = vmatpush1.msra.mxu0 %v212
    %224 = vmatprep.subr.mxu0 0.0
    %225 = vmatpush1.msra.mxu0 0.0
    %226 = vmatprep.subr.mxu0 0.0
    %227 = vmatpush1.msra.mxu0 0.0
    %228 = vmatprep.subr.mxu0 0.0
    %229 = vmatpush1.msra.mxu0 0.0
    %230 = vmatprep.subr.mxu0 0.0
    %231 = vmatpush1.msra.mxu0 0.0
    %232 = vmatprep.subr.mxu0 0.0
    %233 = vmatpush1.msra.mxu0 0.0
    %234 = vmatprep.subr.mxu0 0.0
    %235 = vmatpush1.msra.mxu0 0.0
    %236 = vmatprep.subr.mxu0 0.0
    %237 = vmatpush1.msra.mxu0 0.0
    %238 = vmatprep.subr.mxu0 0.0
    %239 = vmatpush1.msra.mxu0 0.0
    %240 = vmatprep.subr.mxu0 0.0
    %241 = vmatpush1.msra.mxu0 0.0
    %242 = vmatprep.subr.mxu0 0.0
    %243 = vmatpush1.msra.mxu0 0.0
    %244 = vmatprep.subr.mxu0 0.0
    %245 = vmatpush1.msra.mxu0 0.0
    %246 = vmatprep.subr.mxu0 0.0
    %247 = vmatpush1.msra.mxu0 0.0
    %248 = vmatprep.subr.mxu0 0.0
    %249 = vmatpush1.msra.mxu0 0.0
    %250 = vmatprep.subr.mxu0 0.0
    %251 = vmatpush1.msra.mxu0 0.0
    %252 = vmatprep.subr.mxu0 0.0
    %253 = vmatpush1.msra.mxu0 0.0
    %254 = vmatprep.subr.mxu0 0.0
    %255 = vmatpush1.msra.mxu0 0.0
    %256 = vmatprep.subr.mxu0 0.0
    %257 = vmatpush1.msra.mxu0 0.0
    %258 = vmatprep.subr.mxu0 0.0
    %259 = vmatpush1.msra.mxu0 0.0
    %260 = vmatprep.subr.mxu0 0.0
    %261 = vmatpush1.msra.mxu0 0.0
    %262 = vmatprep.subr.mxu0 0.0
    %263 = vmatpush1.msra.mxu0 0.0
    %264 = vmatprep.subr.mxu0 0.0
    %265 = vmatpush1.msra.mxu0 0.0
    %266 = vmatprep.subr.mxu0 0.0
    %267 = vmatpush1.msra.mxu0 0.0
    %268 = vmatprep.subr.mxu0 0.0
    %269 = vmatpush1.msra.mxu0 0.0
    %270 = vmatprep.subr.mxu0 0.0
    %271 = vmatpush1.msra.mxu0 0.0
    %272 = vmatprep.subr.mxu0 0.0
    %273 = vmatpush1.msra.mxu0 0.0
    %274 = vmatprep.subr.mxu0 0.0
    %275 = vmatpush1.msra.mxu0 0.0
    %276 = vmatprep.subr.mxu0 0.0
    %277 = vmatpush1.msra.mxu0 0.0
    %278 = vmatprep.subr.mxu0 0.0
    %279 = vmatpush1.msra.mxu0 0.0
    %280 = vmatprep.mubr.f32.mxu0 0.0
    %281 = vmatmul.mubr.f32.gmra.mrb[0].mxu0 %v214
    %v282 = vpop.f32.mrb[0].mxu0
    %v283 = vadd.f32 0.0, %v282
    %v284 = vpop.f32.mrb[0].mxu0
    %285 = vdwg.mxu0
    %v287 = vsel %vm45, %v119, 0
    %289 = vmatprep.subr.mxu0 0.0
    %290 = vmatpush1.msra.mxu0 %v205
    %291 = vmatprep.subr.mxu0 0.0
    %292 = vmatpush1.msra.mxu0 %v206
    %293 = vmatprep.subr.mxu0 0.0
    %294 = vmatpush1.msra.mxu0 %v207
    %295 = vmatprep.subr.mxu0 0.0
    %296 = vmatpush1.msra.mxu0 %v208
    %297 = vmatprep.subr.mxu0 0.0
    %298 = vmatpush1.msra.mxu0 0.0
    %299 = vmatprep.subr.mxu0 0.0
    %300 = vmatpush1.msra.mxu0 0.0
    %301 = vmatprep.subr.mxu0 0.0
    %302 = vmatpush1.msra.mxu0 0.0
    %303 = vmatprep.subr.mxu0 0.0
    %304 = vmatpush1.msra.mxu0 0.0
    %305 = vmatprep.subr.mxu0 0.0
    %306 = vmatpush1.msra.mxu0 0.0
    %307 = vmatprep.subr.mxu0 0.0
    %308 = vmatpush1.msra.mxu0 0.0
    %309 = vmatprep.subr.mxu0 0.0
    %310 = vmatpush1.msra.mxu0 0.0
    %311 = vmatprep.subr.mxu0 0.0
    %312 = vmatpush1.msra.mxu0 0.0
    %313 = vmatprep.subr.mxu0 0.0
    %314 = vmatpush1.msra.mxu0 0.0
    %315 = vmatprep.subr.mxu0 0.0
    %316 = vmatpush1.msra.mxu0 0.0
    %317 = vmatprep.subr.mxu0 0.0
    %318 = vmatpush1.msra.mxu0 0.0
    %319 = vmatprep.subr.mxu0 0.0
    %320 = vmatpush1.msra.mxu0 0.0
    %321 = vmatprep.subr.mxu0 0.0
    %322 = vmatpush1.msra.mxu0 0.0
    %323 = vmatprep.subr.mxu0 0.0
    %324 = vmatpush1.msra.mxu0 0.0
    %325 = vmatprep.subr.mxu0 0.0
    %326 = vmatpush1.msra.mxu0 0.0
    %327 = vmatprep.subr.mxu0 0.0
    %328 = vmatpush1.msra.mxu0 0.0
    %329 = vmatprep.subr.mxu0 0.0
    %330 = vmatpush1.msra.mxu0 0.0
    %331 = vmatprep.subr.mxu0 0.0
    %332 = vmatpush1.msra.mxu0 0.0
    %333 = vmatprep.subr.mxu0 0.0
    %334 = vmatpush1.msra.mxu0 0.0
    %335 = vmatprep.subr.mxu0 0.0
    %336 = vmatpush1.msra.mxu0 0.0
    %337 = vmatprep.subr.mxu0 0.0
    %338 = vmatpush1.msra.mxu0 0.0
    %339 = vmatprep.subr.mxu0 0.0
    %340 = vmatpush1.msra.mxu0 0.0
    %341 = vmatprep.subr.mxu0 0.0
    %342 = vmatpush1.msra.mxu0 0.0
    %343 = vmatprep.subr.mxu0 0.0
    %344 = vmatpush1.msra.mxu0 0.0
    %345 = vmatprep.subr.mxu0 0.0
    %346 = vmatpush1.msra.mxu0 0.0
    %347 = vmatprep.subr.mxu0 0.0
    %348 = vmatpush1.msra.mxu0 0.0
    %349 = vmatprep.subr.mxu0 0.0
    %350 = vmatpush1.msra.mxu0 0.0
    %351 = vmatprep.subr.mxu0 0.0
    %352 = vmatpush1.msra.mxu0 0.0
    %353 = vmatprep.mubr.f32.mxu0 0.0
    %354 = vmatmul.mubr.f32.gmra.mrb[0].mxu0 %v287
    %v355 = vpop.f32.mrb[0].mxu0
    %v356 = vadd.f32 %v283, %v355
    %v357 = vpop.f32.mrb[0].mxu0
    %358 = vdwg.mxu0
    %v359 = vld [vmem:[%s8] sm:$0x1]
    %v361 = vlaneseq
    %v362 = vshrl.u32 %v361, 7
    %v363 = vsub.s32 0, %v362
    %v364 = vrot.slane %v359, %v363
    %v366 = vadd.f32 %v356, %v364
    %vm367 = vcmask 64512
    %368 = vst.msk [vmem:[#allocation2] sm:$0xff] %vm367, %v366
    // Predicated region
    $region38: #{tpu_custom_call.1} parent=1 // pred_check
      _
    $region39: #{tpu_custom_call.1} parent=1 // pred_check_branch
      %370 = sbr.rel (0) target = $region41
    $region40: #{tpu_custom_call.1} parent=1 // pred_region
      %s372 = ssub.s32 128, 128
      %373 = vsyncadd [#allocation3], %s372
      %s375 = sshll.u32 [#allocation2], 4
      %s376 = int_to_ptr.vmem [resolvable:$true] %s375
      %378 = dma.vmem_to_hbm [thread:$0]  %s376, 128, %s9, [#allocation3]
    $region41: #{tpu_custom_call.1} parent=1 // pred_fallthru
      _
    // Predicated region
    $region42: #{tpu_custom_call.1} parent=1 // pred_check
      _
    $region43: #{tpu_custom_call.1} parent=1 // pred_check_branch
      %380 = sbr.rel (0) target = $region45
    $region44: #{tpu_custom_call.1} parent=1 // pred_region
      %381 = dma.done [#allocation3], 128
    $region45: #{tpu_custom_call.1} parent=1 // pred_fallthru
      _
    %382 = vsyncpa [#allocation3], 1

</llo_original>
